<compile_context>
chip_gen: v7x
topology: tpu7x:2x2x1
jax: 0.10.0
libtpu: 0.0.40
codegen_flags: <defaults>
</compile_context>

<pallas_src>
import jax
import jax.numpy as jnp
from jax.experimental import pallas as pl
from jax.experimental.pallas import tpu as pltpu


# ----------------------------- fused RNN + head kernel -----------------------
def _make_fused_kernel(B, Tc, I, H, n_fc, pad):
    """Kernel ref order:
       x, w_ih, w_hh, b_rnn, [fc_w0, fc_b0, ...], w_out, b_out, out_ref, h_scratch
    `pad` = number of zero timesteps prepended to chunk 0 (0 <= pad < Tc)."""

    def kernel(x_ref, wih_ref, whh_ref, brnn_ref, *refs):
        fc_refs = refs[: 2 * n_fc]
        wout_ref = refs[2 * n_fc]
        bout_ref = refs[2 * n_fc + 1]
        out_ref = refs[2 * n_fc + 2]
        h_ref = refs[2 * n_fc + 3]          # (B, H) f32 carry across chunks

        c = pl.program_id(0)

        @pl.when(c == 0)
        def _init():
            h_ref[...] = jnp.zeros_like(h_ref)

        # ---- Phase 1: hoisted input projection for this time-chunk ---------
        # One (B*Tc, I) @ (I, H) bf16 GEMM instead of Tc tiny per-step matmuls;
        # bias added once per chunk.  f32 accumulation on the MXU.
        wih = wih_ref[...].astype(jnp.bfloat16)
        x2 = x_ref[...].reshape(B * Tc, I).astype(jnp.bfloat16)
        xp = (jnp.dot(x2, wih, preferred_element_type=jnp.float32)
              + brnn_ref[...])                      # (B*Tc, H) f32
        xp = xp.reshape(B, Tc, H)

        # ---- Phase 2: serial recurrence (one dependent matmul per step) ----
        whh = whh_ref[...].astype(jnp.bfloat16)
        keep = c > 0                                # only chunk 0 has pad steps
        h = h_ref[...]                              # (B, H) f32
        for t in range(Tc):                         # short static unroll
            hh = jnp.dot(h.astype(jnp.bfloat16), whh,
                         preferred_element_type=jnp.float32)
            h_new = jnp.tanh(xp[:, t, :] + hh)      # f32 elementwise / EUP tanh
            if t < pad:
                # Front-padded step: valid only for chunks > 0 (c*Tc+t >= pad
                # resolves statically to True for t >= pad, so no select there).
                h = jnp.where(keep, h_new, h)
            else:
                h = h_new
        h_ref[...] = h

        # ---- Phase 3: fused MLP head on the final hidden state -------------
        @pl.when(c == pl.num_programs(0) - 1)
        def _head():
            z = h
            for i in range(n_fc):
                w = fc_refs[2 * i][...].astype(jnp.bfloat16)
                b = fc_refs[2 * i + 1][...]
                z = jnp.maximum(
                    jnp.dot(z.astype(jnp.bfloat16), w,
                            preferred_element_type=jnp.float32) + b,
                    0.0)
            w_out = wout_ref[...].astype(jnp.bfloat16)
            out_ref[...] = (
                jnp.dot(z.astype(jnp.bfloat16), w_out,
                        preferred_element_type=jnp.float32)
                + bout_ref[...]).astype(out_ref.dtype)

    return kernel


# ----------------------------- wrapper ---------------------------------------
_TC_MAX = 32  # per-chunk timesteps statically unrolled in the kernel


def _time_chunking(T):
    """Returns (Tc, pad, n_chunks).  Tc is the block extent along time; x is
    zero-padded at the FRONT by `pad` so (pad + T) == n_chunks * Tc.  Tc is a
    multiple of 8 whenever it is not the full sequence (BlockSpec legality)."""
    if T <= _TC_MAX:
        return T, 0, 1
    Tc = _TC_MAX                               # multiple of 8
    n_chunks = pl.cdiv(T, Tc)
    pad = n_chunks * Tc - T
    return Tc, pad, n_chunks


def _full_spec(shape):
    # Whole-array block, resident (fetched once) across every grid step.
    return pl.BlockSpec(shape, lambda c: (0,) * len(shape))


@jax.jit
def rnn_regressor_forward(x_bti, params):
    """x_bti: (B, T, I) batch_first like PyTorch.  Returns (B, O) f32."""
    B, T, I = x_bti.shape
    H = params["w_ih_t"].shape[1]
    O = params["w_out"].shape[1]
    fc_w, fc_b = params["fc_w"], params["fc_b"]
    n_fc = len(fc_w)

    Tc, pad, n_chunks = _time_chunking(T)
    if pad > 0:
        # Front-pad with zeros; the kernel masks these steps so h stays 0
        # until the first real timestep (identical to h0 = 0 in PyTorch).
        x_bti = jnp.pad(x_bti, ((0, 0), (pad, 0), (0, 0)))

    head_params = []
    for w, b in zip(fc_w, fc_b):
        head_params += [w, b]
    head_params += [params["w_out"], params["b_out"]]

    in_specs = ([pl.BlockSpec((B, Tc, I), lambda c: (0, c, 0)),   # time-chunked x
                 _full_spec((I, H)),
                 _full_spec((H, H)),
                 _full_spec((1, H))]
                + [_full_spec(p.shape) for p in head_params])

    return pl.pallas_call(
        _make_fused_kernel(B, Tc, I, H, n_fc, pad),
        out_shape=jax.ShapeDtypeStruct((B, O), jnp.float32),
        grid=(n_chunks,),
        in_specs=in_specs,
        out_specs=pl.BlockSpec((B, O), lambda c: (0, 0)),
        scratch_shapes=[pltpu.VMEM((B, H), jnp.float32)],
        compiler_params=pltpu.CompilerParams(
            # time-chunk axis is a recurrence -> must stay "arbitrary"
            dimension_semantics=("arbitrary",),
            # explicit VMEM budget: fits all targets incl. v7x (64 MiB phys);
            # working set here is a few KiB, headroom is large.
            vmem_limit_bytes=32 * 1024 * 1024),
    )(x_bti, params["w_ih_t"], params["w_hh_t"], params["b_rnn"], *head_params)


# ----------------------------- pure-JAX reference ----------------------------
def reference_forward(x_bti, params):
    """Mirrors the kernel's numeric policy: bf16 MXU operands, f32 accumulate."""
    bf16 = jnp.bfloat16
    w_ih = params["w_ih_t"].astype(bf16)
    w_hh = params["w_hh_t"].astype(bf16)

    def step(h, x_t):
        pre = (jnp.dot(x_t.astype(bf16), w_ih, preferred_element_type=jnp.float32)
               + params["b_rnn"]
               + jnp.dot(h.astype(bf16), w_hh, preferred_element_type=jnp.float32))
        return jnp.tanh(pre), None

    B = x_bti.shape[0]
    H = params["w_ih_t"].shape[1]
    h0 = jnp.zeros((B, H), jnp.float32)
    h_last, _ = jax.lax.scan(step, h0, jnp.transpose(x_bti, (1, 0, 2)))
    out = h_last
    for w, b in zip(params["fc_w"], params["fc_b"]):
        out = jax.nn.relu(
            jnp.dot(out.astype(bf16), w.astype(bf16),
                    preferred_element_type=jnp.float32) + b)
    return (jnp.dot(out.astype(bf16), params["w_out"].astype(bf16),
                    preferred_element_type=jnp.float32) + params["b_out"])


# ----------------------------- param init ------------------------------------
def init_params(key, input_size, hidden_sizes, output_size):
    ks = jax.random.split(key, 4 + 2 * len(hidden_sizes))
    H0 = hidden_sizes[0]
    scale = 1.0 / jnp.sqrt(H0)
    params = {
        # Pre-transposed: PyTorch stores W_ih as (H, I); we keep (I, H).
        "w_ih_t": jax.random.uniform(ks[0], (input_size, H0), jnp.float32,
                                     -scale, scale),
        "w_hh_t": jax.random.uniform(ks[1], (H0, H0), jnp.float32,
                                     -scale, scale),
        # b_ih + b_hh folded into one bias (same math).
        "b_rnn": jax.random.uniform(ks[2], (1, H0), jnp.float32, -scale, scale),
    }
    fc_w, fc_b = [], []
    ki = 3
    for i in range(len(hidden_sizes) - 1):
        fan_in = hidden_sizes[i]
        s = 1.0 / jnp.sqrt(fan_in)
        fc_w.append(jax.random.uniform(
            ks[ki], (hidden_sizes[i], hidden_sizes[i + 1]), jnp.float32, -s, s))
        fc_b.append(jax.random.uniform(
            ks[ki + 1], (1, hidden_sizes[i + 1]), jnp.float32, -s, s))
        ki += 2
    s = 1.0 / jnp.sqrt(hidden_sizes[-1])
    params["fc_w"] = tuple(fc_w)
    params["fc_b"] = tuple(fc_b)
    params["w_out"] = jax.random.uniform(
        ks[ki], (hidden_sizes[-1], output_size), jnp.float32, -s, s)
    params["b_out"] = jax.random.uniform(
        ks[ki + 1], (1, output_size), jnp.float32, -s, s)
    return params


if __name__ == "__main__":
    B = 2
    input_size = 4
    hidden_sizes = [32, 16]
    output_size = 1

    key = jax.random.PRNGKey(0)
    kx, kx2, kp = jax.random.split(key, 3)
    params = init_params(kp, input_size, hidden_sizes, output_size)

    # Case 1: short sequence (single chunk, no padding).
    T = 8
    x = jax.random.normal(kx, (B, T, input_size), jnp.float32)
    out = jax.block_until_ready(rnn_regressor_forward(x, params))
    ref = reference_forward(x, params)
    assert out.shape == (B, output_size), out.shape
    assert jnp.allclose(out, ref, atol=1e-3, rtol=1e-3), (out, ref)

    # Case 2: longer, non-multiple-of-32 sequence (exercises chunking + the
    # masked front-padding path).
    T2 = 40
    x2 = jax.random.normal(kx2, (B, T2, input_size), jnp.float32)
    out2 = jax.block_until_ready(rnn_regressor_forward(x2, params))
    ref2 = reference_forward(x2, params)
    assert out2.shape == (B, output_size), out2.shape
    assert jnp.allclose(out2, ref2, atol=1e-3, rtol=1e-3), (out2, ref2)

    print("KERNEL_OK")
</pallas_src>

<mosaic_0001>
module attributes {stable_mosaic.version = 11 : i64} {
  func.func @kernel(%arg0: i32, %arg1: memref<2x8x4xf32, #tpu.memory_space<vmem>>, %arg2: memref<4x32xf32, #tpu.memory_space<vmem>>, %arg3: memref<32x32xf32, #tpu.memory_space<vmem>>, %arg4: memref<1x32xf32, #tpu.memory_space<vmem>>, %arg5: memref<32x16xf32, #tpu.memory_space<vmem>>, %arg6: memref<1x16xf32, #tpu.memory_space<vmem>>, %arg7: memref<16x1xf32, #tpu.memory_space<vmem>>, %arg8: memref<1x1xf32, #tpu.memory_space<vmem>>, %arg9: memref<2x1xf32, #tpu.memory_space<vmem>>, %arg10: memref<2x32xf32, #tpu.memory_space<vmem>>) attributes {dimension_semantics = [#tpu.dimension_semantics<arbitrary>], iteration_bounds = array<i64: 1>, scalar_prefetch = 0 : i64, scratch_operands = 1 : i64, tpu.core_type = #tpu.core_type<tc>, window_params = [{transform_indices = @transform_0, window_bounds = array<i64: 2, 8, 4>}, {pipeline_mode = #tpu.pipeline_mode<synchronous>, transform_indices = @transform_1, window_bounds = array<i64: 4, 32>}, {pipeline_mode = #tpu.pipeline_mode<synchronous>, transform_indices = @transform_2, window_bounds = array<i64: 32, 32>}, {pipeline_mode = #tpu.pipeline_mode<synchronous>, transform_indices = @transform_3, window_bounds = array<i64: 1, 32>}, {pipeline_mode = #tpu.pipeline_mode<synchronous>, transform_indices = @transform_4, window_bounds = array<i64: 32, 16>}, {pipeline_mode = #tpu.pipeline_mode<synchronous>, transform_indices = @transform_5, window_bounds = array<i64: 1, 16>}, {pipeline_mode = #tpu.pipeline_mode<synchronous>, transform_indices = @transform_6, window_bounds = array<i64: 16, 1>}, {pipeline_mode = #tpu.pipeline_mode<synchronous>, transform_indices = @transform_7, window_bounds = array<i64: 1, 1>}, {pipeline_mode = #tpu.pipeline_mode<synchronous>, transform_indices = @transform_8, window_bounds = array<i64: 2, 1>}]} {
    %c0_i32 = arith.constant 0 : i32
    %0 = arith.cmpi eq, %arg0, %c0_i32 : i32
    %1 = arith.extui %0 : i1 to i32
    %c0_i32_0 = arith.constant 0 : i32
    %2 = arith.cmpi ne, %1, %c0_i32_0 : i32
    scf.if %2 {
      %cst_23 = arith.constant 0.000000e+00 : f32
      %68 = vector.broadcast %cst_23 : f32 to vector<2x32xf32>
      %c0_24 = arith.constant 0 : index
      %c0_25 = arith.constant 0 : index
      %69 = vector.load %arg10[%c0_24, %c0_25] : memref<2x32xf32, #tpu.memory_space<vmem>>, vector<2x32xf32>
      tpu.vector_store %arg10[%c0_24, %c0_25], %68 {strides = array<i32>} : memref<2x32xf32, #tpu.memory_space<vmem>>, vector<2x32xf32>,
    } else {
    }
    %c0 = arith.constant 0 : index
    %c0_1 = arith.constant 0 : index
    %3 = vector.load %arg2[%c0, %c0_1] : memref<4x32xf32, #tpu.memory_space<vmem>>, vector<4x32xf32>
    %4 = arith.truncf %3 : vector<4x32xf32> to vector<4x32xbf16>
    %c0_2 = arith.constant 0 : index
    %c0_3 = arith.constant 0 : index
    %c0_4 = arith.constant 0 : index
    %5 = vector.load %arg1[%c0_2, %c0_3, %c0_4] : memref<2x8x4xf32, #tpu.memory_space<vmem>>, vector<2x8x4xf32>
    %6 = vector.shape_cast %5 : vector<2x8x4xf32> to vector<16x4xf32>
    %7 = arith.truncf %6 : vector<16x4xf32> to vector<16x4xbf16>
    %cst = arith.constant dense<0.000000e+00> : vector<16x32xf32>
    %8 = tpu.matmul %7, %4, %cst {dimension_numbers = #tpu.dot_dimension_numbers<[1], [0], [0], [1], [0, 0, 1, 1], [], []>} : vector<16x4xbf16>, vector<4x32xbf16>, vector<16x32xf32> -> vector<16x32xf32>
    %c0_5 = arith.constant 0 : index
    %c0_6 = arith.constant 0 : index
    %9 = vector.load %arg4[%c0_5, %c0_6] : memref<1x32xf32, #tpu.memory_space<vmem>>, vector<1x32xf32>
    %10 = vector.broadcast %9 : vector<1x32xf32> to vector<16x32xf32>
    %11 = arith.addf %8, %10 : vector<16x32xf32>
    %12 = vector.shape_cast %11 : vector<16x32xf32> to vector<2x8x32xf32>
    %c0_7 = arith.constant 0 : index
    %c0_8 = arith.constant 0 : index
    %13 = vector.load %arg3[%c0_7, %c0_8] : memref<32x32xf32, #tpu.memory_space<vmem>>, vector<32x32xf32>
    %14 = arith.truncf %13 : vector<32x32xf32> to vector<32x32xbf16>
    %c0_9 = arith.constant 0 : index
    %c0_10 = arith.constant 0 : index
    %15 = vector.load %arg10[%c0_9, %c0_10] : memref<2x32xf32, #tpu.memory_space<vmem>>, vector<2x32xf32>
    %16 = arith.truncf %15 : vector<2x32xf32> to vector<2x32xbf16>
    %cst_11 = arith.constant dense<0.000000e+00> : vector<2x32xf32>
    %17 = tpu.matmul %16, %14, %cst_11 {dimension_numbers = #tpu.dot_dimension_numbers<[1], [0], [0], [1], [0, 0, 1, 1], [], []>} : vector<2x32xbf16>, vector<32x32xbf16>, vector<2x32xf32> -> vector<2x32xf32>
    %18 = vector.extract_strided_slice %12 {offsets = [0, 0, 0], sizes = [2, 1, 32], strides = [1, 1, 1]} : vector<2x8x32xf32> to vector<2x1x32xf32>
    %19 = vector.shape_cast %18 : vector<2x1x32xf32> to vector<2x32xf32>
    %20 = arith.addf %19, %17 : vector<2x32xf32>
    %21 = math.tanh %20 : vector<2x32xf32>
    %22 = arith.truncf %21 : vector<2x32xf32> to vector<2x32xbf16>
    %cst_12 = arith.constant dense<0.000000e+00> : vector<2x32xf32>
    %23 = tpu.matmul %22, %14, %cst_12 {dimension_numbers = #tpu.dot_dimension_numbers<[1], [0], [0], [1], [0, 0, 1, 1], [], []>} : vector<2x32xbf16>, vector<32x32xbf16>, vector<2x32xf32> -> vector<2x32xf32>
    %24 = vector.extract_strided_slice %12 {offsets = [0, 1, 0], sizes = [2, 1, 32], strides = [1, 1, 1]} : vector<2x8x32xf32> to vector<2x1x32xf32>
    %25 = vector.shape_cast %24 : vector<2x1x32xf32> to vector<2x32xf32>
    %26 = arith.addf %25, %23 : vector<2x32xf32>
    %27 = math.tanh %26 : vector<2x32xf32>
    %28 = arith.truncf %27 : vector<2x32xf32> to vector<2x32xbf16>
    %cst_13 = arith.constant dense<0.000000e+00> : vector<2x32xf32>
    %29 = tpu.matmul %28, %14, %cst_13 {dimension_numbers = #tpu.dot_dimension_numbers<[1], [0], [0], [1], [0, 0, 1, 1], [], []>} : vector<2x32xbf16>, vector<32x32xbf16>, vector<2x32xf32> -> vector<2x32xf32>
    %30 = vector.extract_strided_slice %12 {offsets = [0, 2, 0], sizes = [2, 1, 32], strides = [1, 1, 1]} : vector<2x8x32xf32> to vector<2x1x32xf32>
    %31 = vector.shape_cast %30 : vector<2x1x32xf32> to vector<2x32xf32>
    %32 = arith.addf %31, %29 : vector<2x32xf32>
    %33 = math.tanh %32 : vector<2x32xf32>
    %34 = arith.truncf %33 : vector<2x32xf32> to vector<2x32xbf16>
    %cst_14 = arith.constant dense<0.000000e+00> : vector<2x32xf32>
    %35 = tpu.matmul %34, %14, %cst_14 {dimension_numbers = #tpu.dot_dimension_numbers<[1], [0], [0], [1], [0, 0, 1, 1], [], []>} : vector<2x32xbf16>, vector<32x32xbf16>, vector<2x32xf32> -> vector<2x32xf32>
    %36 = vector.extract_strided_slice %12 {offsets = [0, 3, 0], sizes = [2, 1, 32], strides = [1, 1, 1]} : vector<2x8x32xf32> to vector<2x1x32xf32>
    %37 = vector.shape_cast %36 : vector<2x1x32xf32> to vector<2x32xf32>
    %38 = arith.addf %37, %35 : vector<2x32xf32>
    %39 = math.tanh %38 : vector<2x32xf32>
    %40 = arith.truncf %39 : vector<2x32xf32> to vector<2x32xbf16>
    %cst_15 = arith.constant dense<0.000000e+00> : vector<2x32xf32>
    %41 = tpu.matmul %40, %14, %cst_15 {dimension_numbers = #tpu.dot_dimension_numbers<[1], [0], [0], [1], [0, 0, 1, 1], [], []>} : vector<2x32xbf16>, vector<32x32xbf16>, vector<2x32xf32> -> vector<2x32xf32>
    %42 = vector.extract_strided_slice %12 {offsets = [0, 4, 0], sizes = [2, 1, 32], strides = [1, 1, 1]} : vector<2x8x32xf32> to vector<2x1x32xf32>
    %43 = vector.shape_cast %42 : vector<2x1x32xf32> to vector<2x32xf32>
    %44 = arith.addf %43, %41 : vector<2x32xf32>
    %45 = math.tanh %44 : vector<2x32xf32>
    %46 = arith.truncf %45 : vector<2x32xf32> to vector<2x32xbf16>
    %cst_16 = arith.constant dense<0.000000e+00> : vector<2x32xf32>
    %47 = tpu.matmul %46, %14, %cst_16 {dimension_numbers = #tpu.dot_dimension_numbers<[1], [0], [0], [1], [0, 0, 1, 1], [], []>} : vector<2x32xbf16>, vector<32x32xbf16>, vector<2x32xf32> -> vector<2x32xf32>
    %48 = vector.extract_strided_slice %12 {offsets = [0, 5, 0], sizes = [2, 1, 32], strides = [1, 1, 1]} : vector<2x8x32xf32> to vector<2x1x32xf32>
    %49 = vector.shape_cast %48 : vector<2x1x32xf32> to vector<2x32xf32>
    %50 = arith.addf %49, %47 : vector<2x32xf32>
    %51 = math.tanh %50 : vector<2x32xf32>
    %52 = arith.truncf %51 : vector<2x32xf32> to vector<2x32xbf16>
    %cst_17 = arith.constant dense<0.000000e+00> : vector<2x32xf32>
    %53 = tpu.matmul %52, %14, %cst_17 {dimension_numbers = #tpu.dot_dimension_numbers<[1], [0], [0], [1], [0, 0, 1, 1], [], []>} : vector<2x32xbf16>, vector<32x32xbf16>, vector<2x32xf32> -> vector<2x32xf32>
    %54 = vector.extract_strided_slice %12 {offsets = [0, 6, 0], sizes = [2, 1, 32], strides = [1, 1, 1]} : vector<2x8x32xf32> to vector<2x1x32xf32>
    %55 = vector.shape_cast %54 : vector<2x1x32xf32> to vector<2x32xf32>
    %56 = arith.addf %55, %53 : vector<2x32xf32>
    %57 = math.tanh %56 : vector<2x32xf32>
    %58 = arith.truncf %57 : vector<2x32xf32> to vector<2x32xbf16>
    %cst_18 = arith.constant dense<0.000000e+00> : vector<2x32xf32>
    %59 = tpu.matmul %58, %14, %cst_18 {dimension_numbers = #tpu.dot_dimension_numbers<[1], [0], [0], [1], [0, 0, 1, 1], [], []>} : vector<2x32xbf16>, vector<32x32xbf16>, vector<2x32xf32> -> vector<2x32xf32>
    %60 = vector.extract_strided_slice %12 {offsets = [0, 7, 0], sizes = [2, 1, 32], strides = [1, 1, 1]} : vector<2x8x32xf32> to vector<2x1x32xf32>
    %61 = vector.shape_cast %60 : vector<2x1x32xf32> to vector<2x32xf32>
    %62 = arith.addf %61, %59 : vector<2x32xf32>
    %63 = math.tanh %62 : vector<2x32xf32>
    %c0_19 = arith.constant 0 : index
    %c0_20 = arith.constant 0 : index
    %64 = vector.load %arg10[%c0_19, %c0_20] : memref<2x32xf32, #tpu.memory_space<vmem>>, vector<2x32xf32>
    tpu.vector_store %arg10[%c0_19, %c0_20], %63 {strides = array<i32>} : memref<2x32xf32, #tpu.memory_space<vmem>>, vector<2x32xf32>,
    %c0_i32_21 = arith.constant 0 : i32
    %65 = arith.cmpi eq, %arg0, %c0_i32_21 : i32
    %66 = arith.extui %65 : i1 to i32
    %c0_i32_22 = arith.constant 0 : i32
    %67 = arith.cmpi ne, %66, %c0_i32_22 : i32
    scf.if %67 {
      %c0_23 = arith.constant 0 : index
      %c0_24 = arith.constant 0 : index
      %68 = vector.load %arg5[%c0_23, %c0_24] : memref<32x16xf32, #tpu.memory_space<vmem>>, vector<32x16xf32>
      %69 = arith.truncf %68 : vector<32x16xf32> to vector<32x16xbf16>
      %c0_25 = arith.constant 0 : index
      %c0_26 = arith.constant 0 : index
      %70 = vector.load %arg6[%c0_25, %c0_26] : memref<1x16xf32, #tpu.memory_space<vmem>>, vector<1x16xf32>
      %71 = arith.truncf %63 : vector<2x32xf32> to vector<2x32xbf16>
      %cst_27 = arith.constant dense<0.000000e+00> : vector<2x16xf32>
      %72 = tpu.matmul %71, %69, %cst_27 {dimension_numbers = #tpu.dot_dimension_numbers<[1], [0], [0], [1], [0, 0, 1, 1], [], []>} : vector<2x32xbf16>, vector<32x16xbf16>, vector<2x16xf32> -> vector<2x16xf32>
      %73 = vector.broadcast %70 : vector<1x16xf32> to vector<2x16xf32>
      %74 = arith.addf %72, %73 : vector<2x16xf32>
      %cst_28 = arith.constant 0.000000e+00 : f32
      %75 = vector.broadcast %cst_28 : f32 to vector<2x16xf32>
      %76 = arith.maximumf %74, %75 : vector<2x16xf32>
      %c0_29 = arith.constant 0 : index
      %c0_30 = arith.constant 0 : index
      %77 = vector.load %arg7[%c0_29, %c0_30] : memref<16x1xf32, #tpu.memory_space<vmem>>, vector<16x1xf32>
      %78 = arith.truncf %77 : vector<16x1xf32> to vector<16x1xbf16>
      %79 = arith.truncf %76 : vector<2x16xf32> to vector<2x16xbf16>
      %cst_31 = arith.constant dense<0.000000e+00> : vector<2x1xf32>
      %80 = tpu.matmul %79, %78, %cst_31 {dimension_numbers = #tpu.dot_dimension_numbers<[1], [0], [0], [1], [0, 0, 1, 1], [], []>} : vector<2x16xbf16>, vector<16x1xbf16>, vector<2x1xf32> -> vector<2x1xf32>
      %c0_32 = arith.constant 0 : index
      %c0_33 = arith.constant 0 : index
      %81 = vector.load %arg8[%c0_32, %c0_33] : memref<1x1xf32, #tpu.memory_space<vmem>>, vector<1x1xf32>
      %82 = vector.broadcast %81 : vector<1x1xf32> to vector<2x1xf32>
      %83 = arith.addf %80, %82 : vector<2x1xf32>
      %c0_34 = arith.constant 0 : index
      %c0_35 = arith.constant 0 : index
      %84 = vector.load %arg9[%c0_34, %c0_35] : memref<2x1xf32, #tpu.memory_space<vmem>>, vector<2x1xf32>
      tpu.vector_store %arg9[%c0_34, %c0_35], %83 {strides = array<i32>} : memref<2x1xf32, #tpu.memory_space<vmem>>, vector<2x1xf32>,
    } else {
    }
    return
  }
  func.func @transform_0(%arg0: i32) -> (i32, i32, i32) {
    %c0_i32 = arith.constant 0 : i32
    %c0_i32_0 = arith.constant 0 : i32
    %c0_i32_1 = arith.constant 0 : i32
    return %c0_i32, %arg0, %c0_i32_0 : i32, i32, i32
  }
  func.func @transform_1(%arg0: i32) -> (i32, i32) {
    %c0_i32 = arith.constant 0 : i32
    %c0_i32_0 = arith.constant 0 : i32
    %c0_i32_1 = arith.constant 0 : i32
    return %c0_i32, %c0_i32_0 : i32, i32
  }
  func.func @transform_2(%arg0: i32) -> (i32, i32) {
    %c0_i32 = arith.constant 0 : i32
    %c0_i32_0 = arith.constant 0 : i32
    %c0_i32_1 = arith.constant 0 : i32
    return %c0_i32, %c0_i32_0 : i32, i32
  }
  func.func @transform_3(%arg0: i32) -> (i32, i32) {
    %c0_i32 = arith.constant 0 : i32
    %c0_i32_0 = arith.constant 0 : i32
    %c0_i32_1 = arith.constant 0 : i32
    return %c0_i32, %c0_i32_0 : i32, i32
  }
  func.func @transform_4(%arg0: i32) -> (i32, i32) {
    %c0_i32 = arith.constant 0 : i32
    %c0_i32_0 = arith.constant 0 : i32
    %c0_i32_1 = arith.constant 0 : i32
    return %c0_i32, %c0_i32_0 : i32, i32
  }
  func.func @transform_5(%arg0: i32) -> (i32, i32) {
    %c0_i32 = arith.constant 0 : i32
    %c0_i32_0 = arith.constant 0 : i32
    %c0_i32_1 = arith.constant 0 : i32
    return %c0_i32, %c0_i32_0 : i32, i32
  }
  func.func @transform_6(%arg0: i32) -> (i32, i32) {
    %c0_i32 = arith.constant 0 : i32
    %c0_i32_0 = arith.constant 0 : i32
    %c0_i32_1 = arith.constant 0 : i32
    return %c0_i32, %c0_i32_0 : i32, i32
  }
  func.func @transform_7(%arg0: i32) -> (i32, i32) {
    %c0_i32 = arith.constant 0 : i32
    %c0_i32_0 = arith.constant 0 : i32
    %c0_i32_1 = arith.constant 0 : i32
    return %c0_i32, %c0_i32_0 : i32, i32
  }
  func.func @transform_8(%arg0: i32) -> (i32, i32) {
    %c0_i32 = arith.constant 0 : i32
    %c0_i32_0 = arith.constant 0 : i32
    %c0_i32_1 = arith.constant 0 : i32
    return %c0_i32, %c0_i32_0 : i32, i32
  }
}

</mosaic_0001>

<llo_original>
// kernel: rnn_regressor_forward.1
$region0: #{rnn_regressor_forward.1}
  #allocation0 [shape = 'u32[]', space=smem, size = 0x4, offset = 0x4, fixed_abs, tag = 'smem constant byte address 0x4 - core index']
  #allocation1 [shape = 'u32[144,128]{1,0:T(1,128)}', space=vmem, size = 0x12000, scoped, tag = 'internal scratch']
  #allocation2 [shape = 'f32[2,32]{1,0:T(2,128)}', space=vmem, size = 0x400, scoped, tag = 'scratch operand']
  #allocation3 [shape = 'f32[1,1]{1,0:T(1,128)S(1)}', space=vmem, size = 0x200, scoped, tag = 'scoped memory for rnn_regressor_forward.1']
  %s0 = inlined_call_operand.vmem [shape: f32[2,8,4], index: 0, kind: input, shape index: {}]
  %s1 = inlined_call_operand.vmem [shape: f32[4,32], index: 1, kind: input, shape index: {}]
  %s2 = inlined_call_operand.vmem [shape: f32[32,32], index: 2, kind: input, shape index: {}]
  %s3 = inlined_call_operand.vmem [shape: f32[1,32], index: 3, kind: input, shape index: {}]
  %s4 = inlined_call_operand.vmem [shape: f32[32,16], index: 4, kind: input, shape index: {}]
  %s5 = inlined_call_operand.vmem [shape: f32[1,16], index: 5, kind: input, shape index: {}]
  %s6 = inlined_call_operand.vmem [shape: f32[16,1], index: 6, kind: input, shape index: {}]
  %s7 = inlined_call_operand.<no memory space> [shape: f32[1,1], index: 7, kind: input, shape index: {}]
  %s8 = inlined_call_operand.vmem [shape: f32[2,1], index: 8, kind: output, shape index: {}]
  %s9 = sld [smem:[#allocation0]]
  $region50: #{rnn_regressor_forward.1} parent=0
    _
  %s11 = ssub.s32 1, %s9
  %s12 = scalar_select 0, %s11, %s9
  %v13 = vstv %s7
  %14 = vst [vmem:[#allocation3] sm:$0x1] %v13
  // Predicated region
  $region2: #{rnn_regressor_forward.1} parent=0 // pred_check
    _
  $region3: #{rnn_regressor_forward.1} parent=0 // pred_check_branch
    %16 = sbr.rel (0) target = $region5
  $region4: #{rnn_regressor_forward.1} parent=0 // pred_region
    _
  $region5: #{rnn_regressor_forward.1} parent=0 // pred_fallthru
    _
  // Predicated region
  $region6: #{rnn_regressor_forward.1} parent=0 // pred_check
    _
  $region7: #{rnn_regressor_forward.1} parent=0 // pred_check_branch
    %18 = sbr.rel (0) target = $region9
  $region8: #{rnn_regressor_forward.1} parent=0 // pred_region
    _
  $region9: #{rnn_regressor_forward.1} parent=0 // pred_fallthru
    _
  // Predicated region
  $region10: #{rnn_regressor_forward.1} parent=0 // pred_check
    _
  $region11: #{rnn_regressor_forward.1} parent=0 // pred_check_branch
    %20 = sbr.rel (0) target = $region13
  $region12: #{rnn_regressor_forward.1} parent=0 // pred_region
    _
  $region13: #{rnn_regressor_forward.1} parent=0 // pred_fallthru
    _
  // Predicated region
  $region14: #{rnn_regressor_forward.1} parent=0 // pred_check
    _
  $region15: #{rnn_regressor_forward.1} parent=0 // pred_check_branch
    %22 = sbr.rel (0) target = $region17
  $region16: #{rnn_regressor_forward.1} parent=0 // pred_region
    _
  $region17: #{rnn_regressor_forward.1} parent=0 // pred_fallthru
    _
  // Predicated region
  $region18: #{rnn_regressor_forward.1} parent=0 // pred_check
    _
  $region19: #{rnn_regressor_forward.1} parent=0 // pred_check_branch
    %24 = sbr.rel (0) target = $region21
  $region20: #{rnn_regressor_forward.1} parent=0 // pred_region
    _
  $region21: #{rnn_regressor_forward.1} parent=0 // pred_fallthru
    _
  // Predicated region
  $region22: #{rnn_regressor_forward.1} parent=0 // pred_check
    _
  $region23: #{rnn_regressor_forward.1} parent=0 // pred_check_branch
    %26 = sbr.rel (0) target = $region25
  $region24: #{rnn_regressor_forward.1} parent=0 // pred_region
    _
  $region25: #{rnn_regressor_forward.1} parent=0 // pred_fallthru
    _
  // Predicated region
  $region26: #{rnn_regressor_forward.1} parent=0 // pred_check
    _
  $region27: #{rnn_regressor_forward.1} parent=0 // pred_check_branch
    %28 = sbr.rel (0) target = $region29
  $region28: #{rnn_regressor_forward.1} parent=0 // pred_region
    _
  $region29: #{rnn_regressor_forward.1} parent=0 // pred_fallthru
    _
  // Predicated region
  $region30: #{rnn_regressor_forward.1} parent=0 // pred_check
    _
  $region31: #{rnn_regressor_forward.1} parent=0 // pred_check_branch
    %30 = sbr.rel (0) target = $region33
  $region32: #{rnn_regressor_forward.1} parent=0 // pred_region
    _
  $region33: #{rnn_regressor_forward.1} parent=0 // pred_fallthru
    _
  %p32 = scmp.eq.s32.totalorder 0, 0
  // Predicated region
  $region34: #{rnn_regressor_forward.1} parent=0 // pred_check
    %p33 = pneg %p32
  $region35: #{rnn_regressor_forward.1} parent=0 // pred_check_branch
    %35 = sbr.rel (%p33) target = $region37
  $region36: #{rnn_regressor_forward.1} parent=0 // pred_region
    %vm36 = vcmask 254976
    %37 = vst.msk [vmem:[#allocation2] sm:$0x3] %vm36, 0.0
  $region37: #{rnn_regressor_forward.1} parent=0 // pred_fallthru
    _
  %v38 = vld [vmem:[%s1] sm:$0xf]
  %v39 = vpack.c.bf16 %v38, %v38
  %v40 = vld [vmem:[%s0] sm:$0xff]
  %v41 = vld [vmem:[%s0 + $0x8] sm:$0xff]
  %v42 = vpack.c.bf16 %v41, %v40
  %v43 = vld [vmem:[%s3] sm:$0x1]
  %v45 = vlaneseq
  %v46 = vshrl.u32 %v45, 7
  %v47 = vsub.s32 0, %v46
  %v48 = vrot.slane %v43, %v47
  %vm50 = vcmask 31744
  %v52 = vsel %vm50, %v42, 0
  %vm54 = vcmask 1041408
  %v56 = vsel %vm54, %v39, 0
  %58 = vmatprep.subr.bf16.mxu0 0
  %59 = vmatpush1.bf16.msra.mxu0 %v56
  %60 = vmatprep.subr.bf16.mxu0 0
  %61 = vmatpush1.bf16.msra.mxu0 0
  %62 = vmatprep.subr.bf16.mxu0 0
  %63 = vmatpush1.bf16.msra.mxu0 0
  %64 = vmatprep.subr.bf16.mxu0 0
  %65 = vmatpush1.bf16.msra.mxu0 0
  %66 = vmatprep.subr.bf16.mxu0 0
  %67 = vmatpush1.bf16.msra.mxu0 0
  %68 = vmatprep.subr.bf16.mxu0 0
  %69 = vmatpush1.bf16.msra.mxu0 0
  %70 = vmatprep.subr.bf16.mxu0 0
  %71 = vmatpush1.bf16.msra.mxu0 0
  %72 = vmatprep.subr.bf16.mxu0 0
  %73 = vmatpush1.bf16.msra.mxu0 0
  %74 = vmatprep.subr.bf16.mxu0 0
  %75 = vmatpush1.bf16.msra.mxu0 0
  %76 = vmatprep.subr.bf16.mxu0 0
  %77 = vmatpush1.bf16.msra.mxu0 0
  %78 = vmatprep.subr.bf16.mxu0 0
  %79 = vmatpush1.bf16.msra.mxu0 0
  %80 = vmatprep.subr.bf16.mxu0 0
  %81 = vmatpush1.bf16.msra.mxu0 0
  %82 = vmatprep.subr.bf16.mxu0 0
  %83 = vmatpush1.bf16.msra.mxu0 0
  %84 = vmatprep.subr.bf16.mxu0 0
  %85 = vmatpush1.bf16.msra.mxu0 0
  %86 = vmatprep.subr.bf16.mxu0 0
  %87 = vmatpush1.bf16.msra.mxu0 0
  %88 = vmatprep.subr.bf16.mxu0 0
  %89 = vmatpush1.bf16.msra.mxu0 0
  %90 = vmatprep.mubr.bf16.mxu0 0
  %91 = vmatmul.mubr.bf16.gmra.mrb[0].mxu0 %v52
  %v92 = vpop.f32.mrb[0].mxu0
  %v93 = vadd.f32 %v48, %v92
  %v94 = vpop.f32.mrb[0].mxu0
  %v95 = vpop.f32.mrb[0].mxu0
  %v96 = vadd.f32 %v48, %v95
  %v97 = vpop.f32.mrb[0].mxu0
  %98 = vdwg.mxu0
  %v99 = vld [vmem:[%s2] sm:$0xff]
  %v100 = vld [vmem:[%s2 + $0x8] sm:$0xff]
  %v101 = vld [vmem:[%s2 + $0x10] sm:$0xff]
  %v102 = vld [vmem:[%s2 + $0x18] sm:$0xff]
  %v103 = vpack.c.bf16 %v100, %v99
  %v104 = vpack.c.bf16 %v102, %v101
  %v105 = vld [vmem:[#allocation2] sm:$0x3]
  %v106 = vpack.c.bf16 %v105, %v105
  %vm107 = vcmask 261120
  %v109 = vsel %vm107, %v106, 0
  %111 = vmatprep.subr.bf16.mxu0 0
  %112 = vmatpush1.bf16.msra.mxu0 %v103
  %113 = vmatprep.subr.bf16.mxu0 0
  %114 = vmatpush1.bf16.msra.mxu0 %v104
  %115 = vmatprep.subr.bf16.mxu0 0
  %116 = vmatpush1.bf16.msra.mxu0 0
  %117 = vmatprep.subr.bf16.mxu0 0
  %118 = vmatpush1.bf16.msra.mxu0 0
  %119 = vmatprep.subr.bf16.mxu0 0
  %120 = vmatpush1.bf16.msra.mxu0 0
  %121 = vmatprep.subr.bf16.mxu0 0
  %122 = vmatpush1.bf16.msra.mxu0 0
  %123 = vmatprep.subr.bf16.mxu0 0
  %124 = vmatpush1.bf16.msra.mxu0 0
  %125 = vmatprep.subr.bf16.mxu0 0
  %126 = vmatpush1.bf16.msra.mxu0 0
  %127 = vmatprep.subr.bf16.mxu0 0
  %128 = vmatpush1.bf16.msra.mxu0 0
  %129 = vmatprep.subr.bf16.mxu0 0
  %130 = vmatpush1.bf16.msra.mxu0 0
  %131 = vmatprep.subr.bf16.mxu0 0
  %132 = vmatpush1.bf16.msra.mxu0 0
  %133 = vmatprep.subr.bf16.mxu0 0
  %134 = vmatpush1.bf16.msra.mxu0 0
  %135 = vmatprep.subr.bf16.mxu0 0
  %136 = vmatpush1.bf16.msra.mxu0 0
  %137 = vmatprep.subr.bf16.mxu0 0
  %138 = vmatpush1.bf16.msra.mxu0 0
  %139 = vmatprep.subr.bf16.mxu0 0
  %140 = vmatpush1.bf16.msra.mxu0 0
  %141 = vmatprep.subr.bf16.mxu0 0
  %142 = vmatpush1.bf16.msra.mxu0 0
  %143 = vmatprep.mubr.bf16.mxu0 0
  %144 = vmatmul.mubr.bf16.gmra.mrb[0].mxu0 %v109
  %v145 = vpop.f32.mrb[0].mxu0
  %v146 = vadd.f32 0.0, %v145
  %v147 = vpop.f32.mrb[0].mxu0
  %v148 = vpop.f32.mrb[0].mxu0
  %v149 = vpop.f32.mrb[0].mxu0
  %150 = vdwg.mxu0
  %v152 = vrot.slane %v146, 1
  %v155 = vadd.f32 %v93, %v146
  %v156 = vadd.f32 %v96, %v152
  %v157 = vtanh.pop %v155
  %v158 = vtanh.pop %v156
  %v159 = vpack.c.bf16 %v157, %v157
  %v160 = vpack.c.bf16 %v158, %v158
  %v163 = vunpack.c.l.b16 %v159
  %v164 = vunpack.c.l.b16 %v160
  %v165 = vrot.slane %v164, 7
  %vm166 = vcmask 1041409
  %v167 = vsel %vm166, %v165, %v163
  %v168 = vpack.c.b16 %v167, %v167
  %v170 = vsel %vm107, %v168, 0
  %172 = vmatprep.subr.bf16.mxu0 0
  %173 = vmatpush1.bf16.msra.mxu0 %v103
  %174 = vmatprep.subr.bf16.mxu0 0
  %175 = vmatpush1.bf16.msra.mxu0 %v104
  %176 = vmatprep.subr.bf16.mxu0 0
  %177 = vmatpush1.bf16.msra.mxu0 0
  %178 = vmatprep.subr.bf16.mxu0 0
  %179 = vmatpush1.bf16.msra.mxu0 0
  %180 = vmatprep.subr.bf16.mxu0 0
  %181 = vmatpush1.bf16.msra.mxu0 0
  %182 = vmatprep.subr.bf16.mxu0 0
  %183 = vmatpush1.bf16.msra.mxu0 0
  %184 = vmatprep.subr.bf16.mxu0 0
  %185 = vmatpush1.bf16.msra.mxu0 0
  %186 = vmatprep.subr.bf16.mxu0 0
  %187 = vmatpush1.bf16.msra.mxu0 0
  %188 = vmatprep.subr.bf16.mxu0 0
  %189 = vmatpush1.bf16.msra.mxu0 0
  %190 = vmatprep.subr.bf16.mxu0 0
  %191 = vmatpush1.bf16.msra.mxu0 0
  %192 = vmatprep.subr.bf16.mxu0 0
  %193 = vmatpush1.bf16.msra.mxu0 0
  %194 = vmatprep.subr.bf16.mxu0 0
  %195 = vmatpush1.bf16.msra.mxu0 0
  %196 = vmatprep.subr.bf16.mxu0 0
  %197 = vmatpush1.bf16.msra.mxu0 0
  %198 = vmatprep.subr.bf16.mxu0 0
  %199 = vmatpush1.bf16.msra.mxu0 0
  %200 = vmatprep.subr.bf16.mxu0 0
  %201 = vmatpush1.bf16.msra.mxu0 0
  %202 = vmatprep.subr.bf16.mxu0 0
  %203 = vmatpush1.bf16.msra.mxu0 0
  %204 = vmatprep.mubr.bf16.mxu0 0
  %205 = vmatmul.mubr.bf16.gmra.mrb[0].mxu0 %v170
  %v206 = vpop.f32.mrb[0].mxu0
  %v207 = vadd.f32 0.0, %v206
  %v208 = vpop.f32.mrb[0].mxu0
  %v209 = vpop.f32.mrb[0].mxu0
  %v210 = vpop.f32.mrb[0].mxu0
  %211 = vdwg.mxu0
  %v213 = vrot.slane %v207, 7
  %v216 = vadd.f32 %v93, %v213
  %v217 = vadd.f32 %v96, %v207
  %v218 = vtanh.pop %v216
  %v219 = vtanh.pop %v217
  %v220 = vpack.c.bf16 %v218, %v218
  %v221 = vpack.c.bf16 %v219, %v219
  %v224 = vunpack.c.l.b16 %v220
  %v225 = vunpack.c.l.b16 %v221
  %v226 = vrot.slane %v224, 1
  %v227 = vsel %vm166, %v225, %v226
  %v228 = vpack.c.b16 %v227, %v227
  %v230 = vsel %vm107, %v228, 0
  %232 = vmatprep.subr.bf16.mxu0 0
  %233 = vmatpush1.bf16.msra.mxu0 %v103
  %234 = vmatprep.subr.bf16.mxu0 0
  %235 = vmatpush1.bf16.msra.mxu0 %v104
  %236 = vmatprep.subr.bf16.mxu0 0
  %237 = vmatpush1.bf16.msra.mxu0 0
  %238 = vmatprep.subr.bf16.mxu0 0
  %239 = vmatpush1.bf16.msra.mxu0 0
  %240 = vmatprep.subr.bf16.mxu0 0
  %241 = vmatpush1.bf16.msra.mxu0 0
  %242 = vmatprep.subr.bf16.mxu0 0
  %243 = vmatpush1.bf16.msra.mxu0 0
  %244 = vmatprep.subr.bf16.mxu0 0
  %245 = vmatpush1.bf16.msra.mxu0 0
  %246 = vmatprep.subr.bf16.mxu0 0
  %247 = vmatpush1.bf16.msra.mxu0 0
  %248 = vmatprep.subr.bf16.mxu0 0
  %249 = vmatpush1.bf16.msra.mxu0 0
  %250 = vmatprep.subr.bf16.mxu0 0
  %251 = vmatpush1.bf16.msra.mxu0 0
  %252 = vmatprep.subr.bf16.mxu0 0
  %253 = vmatpush1.bf16.msra.mxu0 0
  %254 = vmatprep.subr.bf16.mxu0 0
  %255 = vmatpush1.bf16.msra.mxu0 0
  %256 = vmatprep.subr.bf16.mxu0 0
  %257 = vmatpush1.bf16.msra.mxu0 0
  %258 = vmatprep.subr.bf16.mxu0 0
  %259 = vmatpush1.bf16.msra.mxu0 0
  %260 = vmatprep.subr.bf16.mxu0 0
  %261 = vmatpush1.bf16.msra.mxu0 0
  %262 = vmatprep.subr.bf16.mxu0 0
  %263 = vmatpush1.bf16.msra.mxu0 0
  %264 = vmatprep.mubr.bf16.mxu0 0
  %265 = vmatmul.mubr.bf16.gmra.mrb[0].mxu0 %v230
  %v266 = vpop.f32.mrb[0].mxu0
  %v267 = vadd.f32 0.0, %v266
  %v268 = vpop.f32.mrb[0].mxu0
  %v269 = vpop.f32.mrb[0].mxu0
  %v270 = vpop.f32.mrb[0].mxu0
  %271 = vdwg.mxu0
  %v273 = vrot.slane %v267, 6
  %v274 = vrot.slane %v267, 7
  %v277 = vadd.f32 %v93, %v273
  %v278 = vadd.f32 %v96, %v274
  %v279 = vtanh.pop %v277
  %v280 = vtanh.pop %v278
  %v281 = vpack.c.bf16 %v279, %v279
  %v282 = vpack.c.bf16 %v280, %v280
  %v285 = vunpack.c.l.b16 %v281
  %v286 = vunpack.c.l.b16 %v282
  %v287 = vrot.slane %v285, 2
  %v288 = vrot.slane %v286, 1
  %v289 = vsel %vm166, %v288, %v287
  %v290 = vpack.c.b16 %v289, %v289
  %v292 = vsel %vm107, %v290, 0
  %294 = vmatprep.subr.bf16.mxu0 0
  %295 = vmatpush1.bf16.msra.mxu0 %v103
  %296 = vmatprep.subr.bf16.mxu0 0
  %297 = vmatpush1.bf16.msra.mxu0 %v104
  %298 = vmatprep.subr.bf16.mxu0 0
  %299 = vmatpush1.bf16.msra.mxu0 0
  %300 = vmatprep.subr.bf16.mxu0 0
  %301 = vmatpush1.bf16.msra.mxu0 0
  %302 = vmatprep.subr.bf16.mxu0 0
  %303 = vmatpush1.bf16.msra.mxu0 0
  %304 = vmatprep.subr.bf16.mxu0 0
  %305 = vmatpush1.bf16.msra.mxu0 0
  %306 = vmatprep.subr.bf16.mxu0 0
  %307 = vmatpush1.bf16.msra.mxu0 0
  %308 = vmatprep.subr.bf16.mxu0 0
  %309 = vmatpush1.bf16.msra.mxu0 0
  %310 = vmatprep.subr.bf16.mxu0 0
  %311 = vmatpush1.bf16.msra.mxu0 0
  %312 = vmatprep.subr.bf16.mxu0 0
  %313 = vmatpush1.bf16.msra.mxu0 0
  %314 = vmatprep.subr.bf16.mxu0 0
  %315 = vmatpush1.bf16.msra.mxu0 0
  %316 = vmatprep.subr.bf16.mxu0 0
  %317 = vmatpush1.bf16.msra.mxu0 0
  %318 = vmatprep.subr.bf16.mxu0 0
  %319 = vmatpush1.bf16.msra.mxu0 0
  %320 = vmatprep.subr.bf16.mxu0 0
  %321 = vmatpush1.bf16.msra.mxu0 0
  %322 = vmatprep.subr.bf16.mxu0 0
  %323 = vmatpush1.bf16.msra.mxu0 0
  %324 = vmatprep.subr.bf16.mxu0 0
  %325 = vmatpush1.bf16.msra.mxu0 0
  %326 = vmatprep.mubr.bf16.mxu0 0
  %327 = vmatmul.mubr.bf16.gmra.mrb[0].mxu0 %v292
  %v328 = vpop.f32.mrb[0].mxu0
  %v329 = vadd.f32 0.0, %v328
  %v330 = vpop.f32.mrb[0].mxu0
  %v331 = vpop.f32.mrb[0].mxu0
  %v332 = vpop.f32.mrb[0].mxu0
  %333 = vdwg.mxu0
  %v335 = vrot.slane %v329, 5
  %v336 = vrot.slane %v329, 6
  %v339 = vadd.f32 %v93, %v335
  %v340 = vadd.f32 %v96, %v336
  %v341 = vtanh.pop %v339
  %v342 = vtanh.pop %v340
  %v343 = vpack.c.bf16 %v341, %v341
  %v344 = vpack.c.bf16 %v342, %v342
  %v347 = vunpack.c.l.b16 %v343
  %v348 = vunpack.c.l.b16 %v344
  %v349 = vrot.slane %v347, 3
  %v350 = vrot.slane %v348, 2
  %v351 = vsel %vm166, %v350, %v349
  %v352 = vpack.c.b16 %v351, %v351
  %v354 = vsel %vm107, %v352, 0
  %356 = vmatprep.subr.bf16.mxu0 0
  %357 = vmatpush1.bf16.msra.mxu0 %v103
  %358 = vmatprep.subr.bf16.mxu0 0
  %359 = vmatpush1.bf16.msra.mxu0 %v104
  %360 = vmatprep.subr.bf16.mxu0 0
  %361 = vmatpush1.bf16.msra.mxu0 0
  %362 = vmatprep.subr.bf16.mxu0 0
  %363 = vmatpush1.bf16.msra.mxu0 0
  %364 = vmatprep.subr.bf16.mxu0 0
  %365 = vmatpush1.bf16.msra.mxu0 0
  %366 = vmatprep.subr.bf16.mxu0 0
  %367 = vmatpush1.bf16.msra.mxu0 0
  %368 = vmatprep.subr.bf16.mxu0 0
  %369 = vmatpush1.bf16.msra.mxu0 0
  %370 = vmatprep.subr.bf16.mxu0 0
  %371 = vmatpush1.bf16.msra.mxu0 0
  %372 = vmatprep.subr.bf16.mxu0 0
  %373 = vmatpush1.bf16.msra.mxu0 0
  %374 = vmatprep.subr.bf16.mxu0 0
  %375 = vmatpush1.bf16.msra.mxu0 0
  %376 = vmatprep.subr.bf16.mxu0 0
  %377 = vmatpush1.bf16.msra.mxu0 0
  %378 = vmatprep.subr.bf16.mxu0 0
  %379 = vmatpush1.bf16.msra.mxu0 0
  %380 = vmatprep.subr.bf16.mxu0 0
  %381 = vmatpush1.bf16.msra.mxu0 0
  %382 = vmatprep.subr.bf16.mxu0 0
  %383 = vmatpush1.bf16.msra.mxu0 0
  %384 = vmatprep.subr.bf16.mxu0 0
  %385 = vmatpush1.bf16.msra.mxu0 0
  %386 = vmatprep.subr.bf16.mxu0 0
  %387 = vmatpush1.bf16.msra.mxu0 0
  %388 = vmatprep.mubr.bf16.mxu0 0
  %389 = vmatmul.mubr.bf16.gmra.mrb[0].mxu0 %v354
  %v390 = vpop.f32.mrb[0].mxu0
  %v391 = vadd.f32 0.0, %v390
  %v392 = vpop.f32.mrb[0].mxu0
  %v393 = vpop.f32.mrb[0].mxu0
  %v394 = vpop.f32.mrb[0].mxu0
  %395 = vdwg.mxu0
  %v397 = vrot.slane %v391, 4
  %v398 = vrot.slane %v391, 5
  %v401 = vadd.f32 %v93, %v397
  %v402 = vadd.f32 %v96, %v398
  %v403 = vtanh.pop %v401
  %v404 = vtanh.pop %v402
  %v405 = vpack.c.bf16 %v403, %v403
  %v406 = vpack.c.bf16 %v404, %v404
  %v409 = vunpack.c.l.b16 %v405
  %v410 = vunpack.c.l.b16 %v406
  %v411 = vrot.slane %v409, 4
  %v412 = vrot.slane %v410, 3
  %v413 = vsel %vm166, %v412, %v411
  %v414 = vpack.c.b16 %v413, %v413
  %v416 = vsel %vm107, %v414, 0
  %418 = vmatprep.subr.bf16.mxu0 0
  %419 = vmatpush1.bf16.msra.mxu0 %v103
  %420 = vmatprep.subr.bf16.mxu0 0
  %421 = vmatpush1.bf16.msra.mxu0 %v104
  %422 = vmatprep.subr.bf16.mxu0 0
  %423 = vmatpush1.bf16.msra.mxu0 0
  %424 = vmatprep.subr.bf16.mxu0 0
  %425 = vmatpush1.bf16.msra.mxu0 0
  %426 = vmatprep.subr.bf16.mxu0 0
  %427 = vmatpush1.bf16.msra.mxu0 0
  %428 = vmatprep.subr.bf16.mxu0 0
  %429 = vmatpush1.bf16.msra.mxu0 0
  %430 = vmatprep.subr.bf16.mxu0 0
  %431 = vmatpush1.bf16.msra.mxu0 0
  %432 = vmatprep.subr.bf16.mxu0 0
  %433 = vmatpush1.bf16.msra.mxu0 0
  %434 = vmatprep.subr.bf16.mxu0 0
  %435 = vmatpush1.bf16.msra.mxu0 0
  %436 = vmatprep.subr.bf16.mxu0 0
  %437 = vmatpush1.bf16.msra.mxu0 0
  %438 = vmatprep.subr.bf16.mxu0 0
  %439 = vmatpush1.bf16.msra.mxu0 0
  %440 = vmatprep.subr.bf16.mxu0 0
  %441 = vmatpush1.bf16.msra.mxu0 0
  %442 = vmatprep.subr.bf16.mxu0 0
  %443 = vmatpush1.bf16.msra.mxu0 0
  %444 = vmatprep.subr.bf16.mxu0 0
  %445 = vmatpush1.bf16.msra.mxu0 0
  %446 = vmatprep.subr.bf16.mxu0 0
  %447 = vmatpush1.bf16.msra.mxu0 0
  %448 = vmatprep.subr.bf16.mxu0 0
  %449 = vmatpush1.bf16.msra.mxu0 0
  %450 = vmatprep.mubr.bf16.mxu0 0
  %451 = vmatmul.mubr.bf16.gmra.mrb[0].mxu0 %v416
  %v452 = vpop.f32.mrb[0].mxu0
  %v453 = vadd.f32 0.0, %v452
  %v454 = vpop.f32.mrb[0].mxu0
  %v455 = vpop.f32.mrb[0].mxu0
  %v456 = vpop.f32.mrb[0].mxu0
  %457 = vdwg.mxu0
  %v459 = vrot.slane %v453, 3
  %v460 = vrot.slane %v453, 4
  %v463 = vadd.f32 %v93, %v459
  %v464 = vadd.f32 %v96, %v460
  %v465 = vtanh.pop %v463
  %v466 = vtanh.pop %v464
  %v467 = vpack.c.bf16 %v465, %v465
  %v468 = vpack.c.bf16 %v466, %v466
  %v471 = vunpack.c.l.b16 %v467
  %v472 = vunpack.c.l.b16 %v468
  %v473 = vrot.slane %v471, 5
  %v474 = vrot.slane %v472, 4
  %v475 = vsel %vm166, %v474, %v473
  %v476 = vpack.c.b16 %v475, %v475
  %v478 = vsel %vm107, %v476, 0
  %480 = vmatprep.subr.bf16.mxu0 0
  %481 = vmatpush1.bf16.msra.mxu0 %v103
  %482 = vmatprep.subr.bf16.mxu0 0
  %483 = vmatpush1.bf16.msra.mxu0 %v104
  %484 = vmatprep.subr.bf16.mxu0 0
  %485 = vmatpush1.bf16.msra.mxu0 0
  %486 = vmatprep.subr.bf16.mxu0 0
  %487 = vmatpush1.bf16.msra.mxu0 0
  %488 = vmatprep.subr.bf16.mxu0 0
  %489 = vmatpush1.bf16.msra.mxu0 0
  %490 = vmatprep.subr.bf16.mxu0 0
  %491 = vmatpush1.bf16.msra.mxu0 0
  %492 = vmatprep.subr.bf16.mxu0 0
  %493 = vmatpush1.bf16.msra.mxu0 0
  %494 = vmatprep.subr.bf16.mxu0 0
  %495 = vmatpush1.bf16.msra.mxu0 0
  %496 = vmatprep.subr.bf16.mxu0 0
  %497 = vmatpush1.bf16.msra.mxu0 0
  %498 = vmatprep.subr.bf16.mxu0 0
  %499 = vmatpush1.bf16.msra.mxu0 0
  %500 = vmatprep.subr.bf16.mxu0 0
  %501 = vmatpush1.bf16.msra.mxu0 0
  %502 = vmatprep.subr.bf16.mxu0 0
  %503 = vmatpush1.bf16.msra.mxu0 0
  %504 = vmatprep.subr.bf16.mxu0 0
  %505 = vmatpush1.bf16.msra.mxu0 0
  %506 = vmatprep.subr.bf16.mxu0 0
  %507 = vmatpush1.bf16.msra.mxu0 0
  %508 = vmatprep.subr.bf16.mxu0 0
  %509 = vmatpush1.bf16.msra.mxu0 0
  %510 = vmatprep.subr.bf16.mxu0 0
  %511 = vmatpush1.bf16.msra.mxu0 0
  %512 = vmatprep.mubr.bf16.mxu0 0
  %513 = vmatmul.mubr.bf16.gmra.mrb[0].mxu0 %v478
  %v514 = vpop.f32.mrb[0].mxu0
  %v515 = vadd.f32 0.0, %v514
  %v516 = vpop.f32.mrb[0].mxu0
  %v517 = vpop.f32.mrb[0].mxu0
  %v518 = vpop.f32.mrb[0].mxu0
  %519 = vdwg.mxu0
  %v521 = vrot.slane %v515, 2
  %v522 = vrot.slane %v515, 3
  %v525 = vadd.f32 %v93, %v521
  %v526 = vadd.f32 %v96, %v522
  %v527 = vtanh.pop %v525
  %v528 = vtanh.pop %v526
  %v529 = vpack.c.bf16 %v527, %v527
  %v530 = vpack.c.bf16 %v528, %v528
  %v533 = vunpack.c.l.b16 %v529
  %v534 = vunpack.c.l.b16 %v530
  %v535 = vrot.slane %v533, 6
  %v536 = vrot.slane %v534, 5
  %v537 = vsel %vm166, %v536, %v535
  %v538 = vpack.c.b16 %v537, %v537
  %v540 = vsel %vm107, %v538, 0
  %542 = vmatprep.subr.bf16.mxu0 0
  %543 = vmatpush1.bf16.msra.mxu0 %v103
  %544 = vmatprep.subr.bf16.mxu0 0
  %545 = vmatpush1.bf16.msra.mxu0 %v104
  %546 = vmatprep.subr.bf16.mxu0 0
  %547 = vmatpush1.bf16.msra.mxu0 0
  %548 = vmatprep.subr.bf16.mxu0 0
  %549 = vmatpush1.bf16.msra.mxu0 0
  %550 = vmatprep.subr.bf16.mxu0 0
  %551 = vmatpush1.bf16.msra.mxu0 0
  %552 = vmatprep.subr.bf16.mxu0 0
  %553 = vmatpush1.bf16.msra.mxu0 0
  %554 = vmatprep.subr.bf16.mxu0 0
  %555 = vmatpush1.bf16.msra.mxu0 0
  %556 = vmatprep.subr.bf16.mxu0 0
  %557 = vmatpush1.bf16.msra.mxu0 0
  %558 = vmatprep.subr.bf16.mxu0 0
  %559 = vmatpush1.bf16.msra.mxu0 0
  %560 = vmatprep.subr.bf16.mxu0 0
  %561 = vmatpush1.bf16.msra.mxu0 0
  %562 = vmatprep.subr.bf16.mxu0 0
  %563 = vmatpush1.bf16.msra.mxu0 0
  %564 = vmatprep.subr.bf16.mxu0 0
  %565 = vmatpush1.bf16.msra.mxu0 0
  %566 = vmatprep.subr.bf16.mxu0 0
  %567 = vmatpush1.bf16.msra.mxu0 0
  %568 = vmatprep.subr.bf16.mxu0 0
  %569 = vmatpush1.bf16.msra.mxu0 0
  %570 = vmatprep.subr.bf16.mxu0 0
  %571 = vmatpush1.bf16.msra.mxu0 0
  %572 = vmatprep.subr.bf16.mxu0 0
  %573 = vmatpush1.bf16.msra.mxu0 0
  %574 = vmatprep.mubr.bf16.mxu0 0
  %575 = vmatmul.mubr.bf16.gmra.mrb[0].mxu0 %v540
  %v576 = vpop.f32.mrb[0].mxu0
  %v577 = vadd.f32 0.0, %v576
  %v578 = vpop.f32.mrb[0].mxu0
  %v579 = vpop.f32.mrb[0].mxu0
  %v580 = vpop.f32.mrb[0].mxu0
  %581 = vdwg.mxu0
  %v583 = vrot.slane %v577, 1
  %v584 = vrot.slane %v577, 2
  %v587 = vadd.f32 %v93, %v583
  %v588 = vadd.f32 %v96, %v584
  %v589 = vtanh.pop %v587
  %v590 = vtanh.pop %v588
  %v593 = vrot.slane %v590, 7
  %vm596 = vcmask 261127
  %597 = vst.msk [vmem:[#allocation2 - $0x7] sm:$0x80] %vm596, %v589
  %vm598 = vcmask 253952
  %599 = vst.msk [vmem:[#allocation2 + $0x1] sm:$0x1] %vm598, %v593
  // Predicated region
  $region38: #{rnn_regressor_forward.1} parent=0 // pred_check
    %p600 = pneg %p32
  $region39: #{rnn_regressor_forward.1} parent=0 // pred_check_branch
    %602 = sbr.rel (%p600) target = $region41
  $region40: #{rnn_regressor_forward.1} parent=0 // pred_region
    %v603 = vld [vmem:[%s4] sm:$0xff]
    %v604 = vld [vmem:[%s4 + $0x8] sm:$0xff]
    %v605 = vld [vmem:[%s4 + $0x10] sm:$0xff]
    %v606 = vld [vmem:[%s4 + $0x18] sm:$0xff]
    %v607 = vpack.c.bf16 %v604, %v603
    %v608 = vpack.c.bf16 %v606, %v605
    %v609 = vld [vmem:[%s5] sm:$0x1]
    %v610 = vpack.c.bf16 %v589, %v589
    %v611 = vpack.c.bf16 %v590, %v590
    %v613 = vlaneseq
    %v614 = vshrl.u32 %v613, 7
    %v615 = vsub.s32 0, %v614
    %v616 = vrot.slane %v609, %v615
    %v620 = vunpack.c.l.b16 %v610
    %v621 = vunpack.c.l.b16 %v611
    %v622 = vrot.slane %v620, 7
    %v623 = vrot.slane %v621, 6
    %v624 = vsel %vm166, %v623, %v622
    %v625 = vpack.c.b16 %v624, %v624
    %v627 = vsel %vm107, %v625, 0
    %629 = vmatprep.subr.bf16.mxu0 0
    %630 = vmatpush1.bf16.msra.mxu0 %v607
    %631 = vmatprep.subr.bf16.mxu0 0
    %632 = vmatpush1.bf16.msra.mxu0 %v608
    %633 = vmatprep.subr.bf16.mxu0 0
    %634 = vmatpush1.bf16.msra.mxu0 0
    %635 = vmatprep.subr.bf16.mxu0 0
    %636 = vmatpush1.bf16.msra.mxu0 0
    %637 = vmatprep.subr.bf16.mxu0 0
    %638 = vmatpush1.bf16.msra.mxu0 0
    %639 = vmatprep.subr.bf16.mxu0 0
    %640 = vmatpush1.bf16.msra.mxu0 0
    %641 = vmatprep.subr.bf16.mxu0 0
    %642 = vmatpush1.bf16.msra.mxu0 0
    %643 = vmatprep.subr.bf16.mxu0 0
    %644 = vmatpush1.bf16.msra.mxu0 0
    %645 = vmatprep.subr.bf16.mxu0 0
    %646 = vmatpush1.bf16.msra.mxu0 0
    %647 = vmatprep.subr.bf16.mxu0 0
    %648 = vmatpush1.bf16.msra.mxu0 0
    %649 = vmatprep.subr.bf16.mxu0 0
    %650 = vmatpush1.bf16.msra.mxu0 0
    %651 = vmatprep.subr.bf16.mxu0 0
    %652 = vmatpush1.bf16.msra.mxu0 0
    %653 = vmatprep.subr.bf16.mxu0 0
    %654 = vmatpush1.bf16.msra.mxu0 0
    %655 = vmatprep.subr.bf16.mxu0 0
    %656 = vmatpush1.bf16.msra.mxu0 0
    %657 = vmatprep.subr.bf16.mxu0 0
    %658 = vmatpush1.bf16.msra.mxu0 0
    %659 = vmatprep.subr.bf16.mxu0 0
    %660 = vmatpush1.bf16.msra.mxu0 0
    %661 = vmatprep.mubr.bf16.mxu0 0
    %662 = vmatmul.mubr.bf16.gmra.mrb[0].mxu0 %v627
    %v663 = vpop.f32.mrb[0].mxu0
    %v664 = vadd.f32 %v616, %v663
    %v665 = vpop.f32.mrb[0].mxu0
    %v666 = vpop.f32.mrb[0].mxu0
    %v667 = vpop.f32.mrb[0].mxu0
    %668 = vdwg.mxu0
    %v669 = vmax.f32 %v664, 0.0
    %v670 = vld [vmem:[%s6] sm:$0xff]
    %v671 = vld [vmem:[%s6 + $0x8] sm:$0xff]
    %v672 = vpack.c.bf16 %v671, %v670
    %v673 = vpack.c.bf16 %v669, %v669
    %v674 = vld [vmem:[#allocation3] sm:$0x1]
    %v676 = vlaneseq
    %v677 = vshrl.u32 %v676, 7
    %v678 = vsub.s32 0, %v677
    %v679 = vrot.slane %v674, %v678
    %vm681 = vcmask 130048
    %v683 = vsel %vm681, %v673, 0
    %685 = vmatprep.subr.bf16.mxu0 0
    %686 = vmatpush1.bf16.msra.mxu0 %v672
    %687 = vmatprep.subr.bf16.mxu0 0
    %688 = vmatpush1.bf16.msra.mxu0 0
    %689 = vmatprep.subr.bf16.mxu0 0
    %690 = vmatpush1.bf16.msra.mxu0 0
    %691 = vmatprep.subr.bf16.mxu0 0
    %692 = vmatpush1.bf16.msra.mxu0 0
    %693 = vmatprep.subr.bf16.mxu0 0
    %694 = vmatpush1.bf16.msra.mxu0 0
    %695 = vmatprep.subr.bf16.mxu0 0
    %696 = vmatpush1.bf16.msra.mxu0 0
    %697 = vmatprep.subr.bf16.mxu0 0
    %698 = vmatpush1.bf16.msra.mxu0 0
    %699 = vmatprep.subr.bf16.mxu0 0
    %700 = vmatpush1.bf16.msra.mxu0 0
    %701 = vmatprep.subr.bf16.mxu0 0
    %702 = vmatpush1.bf16.msra.mxu0 0
    %703 = vmatprep.subr.bf16.mxu0 0
    %704 = vmatpush1.bf16.msra.mxu0 0
    %705 = vmatprep.subr.bf16.mxu0 0
    %706 = vmatpush1.bf16.msra.mxu0 0
    %707 = vmatprep.subr.bf16.mxu0 0
    %708 = vmatpush1.bf16.msra.mxu0 0
    %709 = vmatprep.subr.bf16.mxu0 0
    %710 = vmatpush1.bf16.msra.mxu0 0
    %711 = vmatprep.subr.bf16.mxu0 0
    %712 = vmatpush1.bf16.msra.mxu0 0
    %713 = vmatprep.subr.bf16.mxu0 0
    %714 = vmatpush1.bf16.msra.mxu0 0
    %715 = vmatprep.subr.bf16.mxu0 0
    %716 = vmatpush1.bf16.msra.mxu0 0
    %717 = vmatprep.mubr.bf16.mxu0 0
    %718 = vmatmul.mubr.bf16.gmra.mrb[0].mxu0 %v683
    %v719 = vpop.f32.mrb[0].mxu0
    %v720 = vadd.f32 %v679, %v719
    %v721 = vpop.f32.mrb[0].mxu0
    %v722 = vpop.f32.mrb[0].mxu0
    %v723 = vpop.f32.mrb[0].mxu0
    %724 = vdwg.mxu0
    %vm725 = vcmask 1024
    %726 = vst.msk [vmem:[%s8] sm:$0x3] %vm725, %v720
  $region41: #{rnn_regressor_forward.1} parent=0 // pred_fallthru
    _
  // Predicated region
  $region42: #{rnn_regressor_forward.1} parent=0 // pred_check
    _
  $region43: #{rnn_regressor_forward.1} parent=0 // pred_check_branch
    %728 = sbr.rel (0) target = $region45
  $region44: #{rnn_regressor_forward.1} parent=0 // pred_region
    _
  $region45: #{rnn_regressor_forward.1} parent=0 // pred_fallthru
    _
  // Predicated region
  $region46: #{rnn_regressor_forward.1} parent=0 // pred_check
    _
  $region47: #{rnn_regressor_forward.1} parent=0 // pred_check_branch
    %730 = sbr.rel (0) target = $region49
  $region48: #{rnn_regressor_forward.1} parent=0 // pred_region
    _
  $region49: #{rnn_regressor_forward.1} parent=0 // pred_fallthru
    _

</llo_original>
